<compile_context>
chip_gen: v7x
topology: tpu7x:2x2x1
jax: 0.10.0
libtpu: 0.0.40
codegen_flags: <defaults>
</compile_context>

<pallas_src>
import functools

import jax
import jax.numpy as jnp
from jax.experimental import pallas as pl
from jax.experimental.pallas import tpu as pltpu

BN_EPS = 1e-5
LANE_TILE = 512  # default batch tile on the lane axis (sweep 512/1024 on big batches)


# ---------------------------------------------------------------------------
# Kernel
# ---------------------------------------------------------------------------
def dcn_kernel(num_cross_layers, mlp_dims, vocab,
               idx_ref, tab_ref, cross_ref, *rest):
    """Fused DCN forward in transposed (feature-on-sublane, batch-on-lane) layout.

    idx_ref   : (F, TB) int32   offset token indices for this batch tile.
    tab_ref   : (d0, V) bf16    block-diagonal field-expanded embedding table.
    cross_ref : (d0, 2L+1) f32  columns = [wc_0..wc_{L-1}, bc_0..bc_{L-1}, wf_cross].
    rest      : per deep layer Wt_l (out,in) bf16 [BN folded],
                then deep_pack (max_out, L_deep+1) f32 = [b_0..b_{L-1}, wf_deep],
                bf (1,1) f32 in SMEM, out_ref (1, TB) f32.
    """
    num_deep = len(mlp_dims)
    w_refs = rest[:num_deep]
    dpack_ref, bf_ref, out_ref = rest[num_deep:]

    num_fields, tb = idx_ref.shape
    idx = idx_ref[...]                                          # (F, TB) int32

    # ---- In-kernel embedding gather: exact one-hot + one MXU matmul -----------
    # Fields map to disjoint vocab ranges, so the summed one-hot G stays {0,1}
    # and tab (block-diagonal per field) @ G reproduces the gathered embeddings.
    iota_v = jax.lax.broadcasted_iota(jnp.int32, (vocab, tb), 0)
    g = jnp.zeros((vocab, tb), jnp.float32)
    for f in range(num_fields):
        g = g + (iota_v == idx[f:f + 1, :]).astype(jnp.float32)
    x0 = jnp.dot(tab_ref[...], g.astype(tab_ref.dtype),
                 preferred_element_type=jnp.float32)            # (d0, TB) f32

    # ---- Cross network: x_{l+1} = x0 * <w_l, x_l> + b_l + x_l ------------------
    # VPU multiply + XLU sublane reduction (no N=1 MXU matmuls), all f32.
    L = num_cross_layers
    cross = cross_ref[...]                                      # (d0, 2L+1)
    xc = x0
    for i in range(L):
        w_col = cross[:, i:i + 1]                               # (d0, 1)
        b_col = cross[:, L + i:L + i + 1]                       # (d0, 1)
        xw = jnp.sum(xc * w_col, axis=0, keepdims=True)         # (1, TB)
        xc = x0 * xw + b_col + xc

    # ---- Deep network: (Linear + folded BN) -> ReLU, bf16 MXU feeds, f32 acc ---
    dpack = dpack_ref[...]                                      # (max_out, L_deep+1)
    h = x0
    for l, out_dim in enumerate(mlp_dims):
        Wt = w_refs[l][...]                                     # (out, in) bf16
        b = dpack[:out_dim, l:l + 1]                            # (out, 1) f32
        h = jnp.dot(Wt, h.astype(Wt.dtype),
                    preferred_element_type=jnp.float32) + b
        h = jnp.maximum(h, 0.0)
        # Dropout: identity in eval mode.

    # ---- Final linear (concat-free) + sigmoid ----------------------------------
    wf_cross = cross[:, 2 * L:2 * L + 1]                        # (d0, 1)
    wf_deep = dpack[:mlp_dims[-1], num_deep:num_deep + 1]       # (m_last, 1)
    logit = (jnp.sum(xc * wf_cross, axis=0, keepdims=True)
             + jnp.sum(h * wf_deep, axis=0, keepdims=True)
             + bf_ref[0, 0])                                    # (1, TB)
    out_ref[...] = jax.nn.sigmoid(logit)


# ---------------------------------------------------------------------------
# Parameters (mirror the PyTorch module) + one-time host-side preparation
# ---------------------------------------------------------------------------
def init_params(key, field_dims, embed_dim, num_cross_layers, mlp_dims):
    num_fields = len(field_dims)
    d0 = num_fields * embed_dim
    keys = iter(jax.random.split(key, 64))

    params = {}
    params["embedding"] = jax.random.normal(
        next(keys), (sum(field_dims), embed_dim), jnp.float32) * 0.1
    offsets = jnp.array(
        [0] + list(jnp.cumsum(jnp.array(field_dims))[:-1]), dtype=jnp.int32)
    params["offsets"] = offsets

    # Cross network: w_i = Linear(d0, 1, bias=False); b_i = zeros(d0)
    bound = 1.0 / jnp.sqrt(jnp.float32(d0))
    params["wc"] = jax.random.uniform(
        next(keys), (num_cross_layers, d0), jnp.float32, -bound, bound)
    params["bc"] = jnp.zeros((num_cross_layers, d0), jnp.float32)

    # Deep network layers: Linear -> BatchNorm1d -> ReLU -> Dropout
    in_dim = d0
    for l, out_dim in enumerate(mlp_dims):
        b = 1.0 / jnp.sqrt(jnp.float32(in_dim))
        params[f"deep_{l}_W"] = jax.random.uniform(
            next(keys), (in_dim, out_dim), jnp.float32, -b, b)
        params[f"deep_{l}_b"] = jax.random.uniform(
            next(keys), (1, out_dim), jnp.float32, -b, b)
        params[f"deep_{l}_gamma"] = jnp.ones((1, out_dim), jnp.float32)
        params[f"deep_{l}_beta"] = jnp.zeros((1, out_dim), jnp.float32)
        params[f"deep_{l}_mean"] = jnp.zeros((1, out_dim), jnp.float32)
        params[f"deep_{l}_var"] = jnp.ones((1, out_dim), jnp.float32)
        in_dim = out_dim

    # Final linear: (d0 + mlp_dims[-1]) -> 1
    d_total = d0 + mlp_dims[-1]
    b = 1.0 / jnp.sqrt(jnp.float32(d_total))
    params["wf"] = jax.random.uniform(
        next(keys), (d_total, 1), jnp.float32, -b, b)
    params["bf"] = jax.random.uniform(next(keys), (1, 1), jnp.float32, -b, b)
    return params


def prepare_params(params, field_dims, embed_dim, num_cross_layers, mlp_dims):
    """One-time host-side weight prep (kept off the per-batch latency path)."""
    num_fields = len(field_dims)
    d0 = num_fields * embed_dim
    vocab = sum(field_dims)
    offsets = [0]
    for fd in field_dims[:-1]:
        offsets.append(offsets[-1] + fd)

    # Block-diagonal field-expanded embedding table (d0, V):
    #   tab[f*E + e, v] = emb[v, e]  if v is in field f's vocab range else 0.
    emb = params["embedding"]                                   # (V, E) f32
    tab = jnp.zeros((d0, vocab), jnp.float32)
    for f in range(num_fields):
        s = offsets[f]
        e = s + field_dims[f]
        tab = tab.at[f * embed_dim:(f + 1) * embed_dim, s:e].set(emb[s:e, :].T)
    tab = tab.astype(jnp.bfloat16)

    # Cross weights / biases / wf_cross packed as columns (d0, 2L+1), f32.
    cross_pack = jnp.concatenate(
        [params["wc"].T, params["bc"].T, params["wf"][:d0]], axis=1)

    # Deep layers: fold eval-mode BatchNorm into the Linear; pre-transpose; bf16.
    w_list, bcols = [], []
    for l in range(len(mlp_dims)):
        scale = params[f"deep_{l}_gamma"] * jax.lax.rsqrt(
            params[f"deep_{l}_var"] + BN_EPS)                   # (1, out)
        Wt = (params[f"deep_{l}_W"] * scale).T.astype(jnp.bfloat16)   # (out, in)
        bcol = ((params[f"deep_{l}_b"] - params[f"deep_{l}_mean"]) * scale
                + params[f"deep_{l}_beta"]).T                   # (out, 1) f32
        w_list.append(Wt)
        bcols.append(bcol)

    # Deep biases + wf_deep packed as columns (max_out, L_deep+1), f32.
    max_out = max(mlp_dims)
    cols = [jnp.pad(c, ((0, max_out - c.shape[0]), (0, 0))) for c in bcols]
    wf_deep = params["wf"][d0:]
    cols.append(jnp.pad(wf_deep, ((0, max_out - wf_deep.shape[0]), (0, 0))))
    deep_pack = jnp.concatenate(cols, axis=1)

    return {
        "offsets": params["offsets"],
        "table_bd": tab,
        "cross_pack": cross_pack,
        "deep_w": tuple(w_list),
        "deep_pack": deep_pack,
        "bf": params["bf"],
        "d0": d0,
        "vocab": vocab,
    }


# ---------------------------------------------------------------------------
# Forward wrapper
# ---------------------------------------------------------------------------
def _choose_lane_tile(batch, desired=LANE_TILE):
    b128 = pl.cdiv(batch, 128) * 128
    if b128 <= desired:
        # Batch fits in one tile: split in two when possible so v7x's two
        # TensorCores (dimension_semantics=("parallel",)) both get work.
        return b128 // 2 if (b128 % 256 == 0) else b128
    return desired


def dcn_forward(tokens, prep, field_dims, embed_dim, num_cross_layers, mlp_dims,
                desired_lane_tile=LANE_TILE):
    num_fields = len(field_dims)
    mlp_dims = tuple(mlp_dims)
    d0, vocab = prep["d0"], prep["vocab"]
    B = tokens.shape[0]

    # Offset token indices, transposed lane-dense: fields on sublanes, batch lanes.
    idx_t = (tokens.astype(jnp.int32) + prep["offsets"][None, :]).T   # (F, B)
    lane_tile = _choose_lane_tile(B, desired_lane_tile)
    n_tiles = pl.cdiv(pl.cdiv(B, 128) * 128, lane_tile)
    b_pad = n_tiles * lane_tile
    idx_t = jnp.pad(idx_t, ((0, 0), (0, b_pad - B)))                  # (F, b_pad)

    flat_inputs = [idx_t, prep["table_bd"], prep["cross_pack"],
                   *prep["deep_w"], prep["deep_pack"], prep["bf"]]
    in_specs = [
        pl.BlockSpec((num_fields, lane_tile), lambda i: (0, i)),
        pl.BlockSpec(prep["table_bd"].shape, lambda i: (0, 0)),
        pl.BlockSpec(prep["cross_pack"].shape, lambda i: (0, 0)),
    ]
    for W in prep["deep_w"]:
        in_specs.append(pl.BlockSpec(W.shape, lambda i: (0, 0)))
    in_specs.append(pl.BlockSpec(prep["deep_pack"].shape, lambda i: (0, 0)))
    in_specs.append(pl.BlockSpec(memory_space=pltpu.MemorySpace.SMEM))   # scalar bf

    # Advisory cost estimate for XLA scheduling around the custom call.
    deep_flops, in_dim = 0, d0
    for m in mlp_dims:
        deep_flops += 2 * in_dim * m
        in_dim = m
    flops_per_sample = (2 * d0 * vocab + num_cross_layers * 4 * d0
                        + deep_flops + 2 * (d0 + mlp_dims[-1]))
    weight_bytes = sum(int(a.size) * a.dtype.itemsize for a in flat_inputs[1:])
    cost = pl.CostEstimate(
        flops=int(b_pad * flops_per_sample),
        transcendentals=int(b_pad),
        bytes_accessed=int(idx_t.size * 4 + b_pad * 4 + weight_bytes))

    kernel = functools.partial(dcn_kernel, num_cross_layers, mlp_dims, vocab)
    out = pl.pallas_call(
        kernel,
        out_shape=jax.ShapeDtypeStruct((1, b_pad), jnp.float32),
        grid=(n_tiles,),
        in_specs=in_specs,
        out_specs=pl.BlockSpec((1, lane_tile), lambda i: (0, i)),
        compiler_params=pltpu.CompilerParams(
            dimension_semantics=("parallel",)),
        cost_estimate=cost,
    )(*flat_inputs)
    return out[0, :B]  # matches torch .squeeze(1)


# ---------------------------------------------------------------------------
# References
# ---------------------------------------------------------------------------
def dcn_reference(tokens, params, field_dims, embed_dim, num_cross_layers, mlp_dims):
    """Pure-f32 reference = original PyTorch module semantics (eval mode)."""
    num_fields = len(field_dims)
    d0 = num_fields * embed_dim
    B = tokens.shape[0]
    idx = tokens + params["offsets"][None, :]
    x0 = params["embedding"][idx].reshape(B, d0).astype(jnp.float32)

    xc = x0
    for i in range(num_cross_layers):
        xw = xc @ params["wc"][i][:, None]
        xc = x0 * xw + params["bc"][i][None, :] + xc

    h = x0
    for l in range(len(mlp_dims)):
        h = h @ params[f"deep_{l}_W"] + params[f"deep_{l}_b"]
        h = (h - params[f"deep_{l}_mean"]) / jnp.sqrt(params[f"deep_{l}_var"] + BN_EPS)
        h = h * params[f"deep_{l}_gamma"] + params[f"deep_{l}_beta"]
        h = jnp.maximum(h, 0.0)

    stacked = jnp.concatenate([xc, h], axis=1)
    logit = stacked @ params["wf"] + params["bf"]
    return jax.nn.sigmoid(logit)[:, 0]


def dcn_reference_prepared(tokens, prep, field_dims, num_cross_layers, mlp_dims):
    """Reference using the prepared (bf16-stored, BN-folded) params in f32 math.

    Tracks the kernel's precision policy, so the comparison is tight.
    """
    B = tokens.shape[0]
    mlp_dims = tuple(mlp_dims)
    d0 = prep["d0"]
    idx = tokens.astype(jnp.int32) + prep["offsets"][None, :]        # (B, F)
    tab = prep["table_bd"].astype(jnp.float32)                       # (d0, V)

    x0 = jnp.zeros((B, d0), jnp.float32)
    for f in range(len(field_dims)):
        x0 = x0 + tab[:, idx[:, f]].T                                # exact gather

    L = num_cross_layers
    cross = prep["cross_pack"]
    xc = x0
    for i in range(L):
        xw = xc @ cross[:, i:i + 1]
        xc = x0 * xw + cross[:, L + i][None, :] + xc

    h = x0
    for l, m in enumerate(mlp_dims):
        Wt = prep["deep_w"][l].astype(jnp.float32)                   # (out, in)
        b = prep["deep_pack"][:m, l]
        h_bf = h.astype(jnp.bfloat16).astype(jnp.float32)            # bf16 MXU feed
        h = jnp.maximum(h_bf @ Wt.T + b[None, :], 0.0)

    wfc = cross[:, 2 * L]
    wfd = prep["deep_pack"][:mlp_dims[-1], len(mlp_dims)]
    logit = xc @ wfc + h @ wfd + prep["bf"][0, 0]
    return jax.nn.sigmoid(logit)


# ---------------------------------------------------------------------------
# Main
# ---------------------------------------------------------------------------
if __name__ == "__main__":
    field_dims = [8, 12, 10]       # 3 categorical fields
    embed_dim = 8                  # embed_output_dim = 24
    num_cross_layers = 3
    mlp_dims = (16, 8)

    key = jax.random.PRNGKey(0)
    pkey, dkey = jax.random.split(key)
    params = init_params(pkey, field_dims, embed_dim, num_cross_layers, mlp_dims)
    prep = prepare_params(params, field_dims, embed_dim, num_cross_layers, mlp_dims)

    for batch in (8, 600):         # single-tile and multi-tile (padded) paths
        subkeys = jax.random.split(jax.random.fold_in(dkey, batch), len(field_dims))
        cols = [jax.random.randint(subkeys[j], (batch, 1), 0, field_dims[j], jnp.int32)
                for j in range(len(field_dims))]
        tokens = jnp.concatenate(cols, axis=1)

        out = dcn_forward(tokens, prep, field_dims, embed_dim,
                          num_cross_layers, mlp_dims)
        out = jax.block_until_ready(out)
        assert out.shape == (batch,), out.shape

        # Tight check: same (bf16-stored, BN-folded) params, f32 accumulation.
        ref_tight = dcn_reference_prepared(tokens, prep, field_dims,
                                           num_cross_layers, mlp_dims)
        assert jnp.allclose(out, ref_tight, atol=5e-4, rtol=5e-4), (
            float(jnp.max(jnp.abs(out - ref_tight))))

        # Module-semantics check vs. the pure-f32 reference (loose tolerance
        # accounts for the bf16 storage of the table / deep weights).
        ref_f32 = dcn_reference(tokens, params, field_dims, embed_dim,
                                num_cross_layers, mlp_dims)
        assert jnp.allclose(out, ref_f32, atol=2e-2, rtol=2e-2), (
            float(jnp.max(jnp.abs(out - ref_f32))))

    print("KERNEL_OK")
</pallas_src>

<mosaic_0001>
module attributes {stable_mosaic.version = 11 : i64} {
  func.func @dcn_kernel(%arg0: i32, %arg1: memref<3x128xi32, #tpu.memory_space<vmem>>, %arg2: memref<24x30xbf16, #tpu.memory_space<vmem>>, %arg3: memref<24x7xf32, #tpu.memory_space<vmem>>, %arg4: memref<16x24xbf16, #tpu.memory_space<vmem>>, %arg5: memref<8x16xbf16, #tpu.memory_space<vmem>>, %arg6: memref<16x3xf32, #tpu.memory_space<vmem>>, %arg7: memref<1x1xf32, #tpu.memory_space<smem>>, %arg8: memref<1x128xf32, #tpu.memory_space<vmem>>) attributes {dimension_semantics = [#tpu.dimension_semantics<parallel>], iteration_bounds = array<i64: 1>, scalar_prefetch = 0 : i64, scratch_operands = 0 : i64, tpu.core_type = #tpu.core_type<tc>, window_params = [{transform_indices = @transform_0, window_bounds = array<i64: 3, 128>}, {pipeline_mode = #tpu.pipeline_mode<synchronous>, transform_indices = @transform_1, window_bounds = array<i64: 24, 30>}, {pipeline_mode = #tpu.pipeline_mode<synchronous>, transform_indices = @transform_2, window_bounds = array<i64: 24, 7>}, {pipeline_mode = #tpu.pipeline_mode<synchronous>, transform_indices = @transform_3, window_bounds = array<i64: 16, 24>}, {pipeline_mode = #tpu.pipeline_mode<synchronous>, transform_indices = @transform_4, window_bounds = array<i64: 8, 16>}, {pipeline_mode = #tpu.pipeline_mode<synchronous>, transform_indices = @transform_5, window_bounds = array<i64: 16, 3>}, {transform_indices = @transform_6, window_bounds = array<i64: 1, 1>}, {transform_indices = @transform_7, window_bounds = array<i64: 1, 128>}]} {
    %c0 = arith.constant 0 : index
    %c0_0 = arith.constant 0 : index
    %0 = vector.load %arg1[%c0, %c0_0] : memref<3x128xi32, #tpu.memory_space<vmem>>, vector<3x128xi32>
    %1 = tpu.iota {dimensions = array<i32: 0>} : vector<30x128xi32>
    %cst = arith.constant 0.000000e+00 : f32
    %2 = vector.broadcast %cst : f32 to vector<30x128xf32>
    %3 = vector.extract_strided_slice %0 {offsets = [0, 0], sizes = [1, 128], strides = [1, 1]} : vector<3x128xi32> to vector<1x128xi32>
    %4 = vector.broadcast %3 : vector<1x128xi32> to vector<30x128xi32>
    %5 = arith.cmpi eq, %1, %4 : vector<30x128xi32>
    %6 = arith.extui %5 : vector<30x128xi1> to vector<30x128xi32>
    %7 = arith.sitofp %6 : vector<30x128xi32> to vector<30x128xf32>
    %8 = arith.addf %2, %7 : vector<30x128xf32>
    %9 = vector.extract_strided_slice %0 {offsets = [1, 0], sizes = [1, 128], strides = [1, 1]} : vector<3x128xi32> to vector<1x128xi32>
    %10 = vector.broadcast %9 : vector<1x128xi32> to vector<30x128xi32>
    %11 = arith.cmpi eq, %1, %10 : vector<30x128xi32>
    %12 = arith.extui %11 : vector<30x128xi1> to vector<30x128xi32>
    %13 = arith.sitofp %12 : vector<30x128xi32> to vector<30x128xf32>
    %14 = arith.addf %8, %13 : vector<30x128xf32>
    %15 = vector.extract_strided_slice %0 {offsets = [2, 0], sizes = [1, 128], strides = [1, 1]} : vector<3x128xi32> to vector<1x128xi32>
    %16 = vector.broadcast %15 : vector<1x128xi32> to vector<30x128xi32>
    %17 = arith.cmpi eq, %1, %16 : vector<30x128xi32>
    %18 = arith.extui %17 : vector<30x128xi1> to vector<30x128xi32>
    %19 = arith.sitofp %18 : vector<30x128xi32> to vector<30x128xf32>
    %20 = arith.addf %14, %19 : vector<30x128xf32>
    %c0_1 = arith.constant 0 : index
    %c0_2 = arith.constant 0 : index
    %21 = vector.load %arg2[%c0_1, %c0_2] : memref<24x30xbf16, #tpu.memory_space<vmem>>, vector<24x30xbf16>
    %22 = arith.truncf %20 : vector<30x128xf32> to vector<30x128xbf16>
    %cst_3 = arith.constant dense<0.000000e+00> : vector<24x128xf32>
    %23 = tpu.matmul %21, %22, %cst_3 {dimension_numbers = #tpu.dot_dimension_numbers<[1], [0], [0], [1], [0, 0, 1, 1], [], []>} : vector<24x30xbf16>, vector<30x128xbf16>, vector<24x128xf32> -> vector<24x128xf32>
    %c0_4 = arith.constant 0 : index
    %c0_5 = arith.constant 0 : index
    %24 = vector.load %arg3[%c0_4, %c0_5] : memref<24x7xf32, #tpu.memory_space<vmem>>, vector<24x7xf32>
    %25 = vector.extract_strided_slice %24 {offsets = [0, 0], sizes = [24, 1], strides = [1, 1]} : vector<24x7xf32> to vector<24x1xf32>
    %26 = vector.extract_strided_slice %24 {offsets = [0, 3], sizes = [24, 1], strides = [1, 1]} : vector<24x7xf32> to vector<24x1xf32>
    %27 = vector.broadcast %25 : vector<24x1xf32> to vector<24x128xf32>
    %28 = arith.mulf %23, %27 : vector<24x128xf32>
    %cst_6 = arith.constant dense<0.000000e+00> : vector<128xf32>
    %29 = vector.multi_reduction <add>, %28, %cst_6 [0] : vector<24x128xf32> to vector<128xf32>
    %30 = vector.shape_cast %29 : vector<128xf32> to vector<1x128xf32>
    %31 = vector.broadcast %30 : vector<1x128xf32> to vector<24x128xf32>
    %32 = arith.mulf %23, %31 : vector<24x128xf32>
    %33 = vector.broadcast %26 : vector<24x1xf32> to vector<24x128xf32>
    %34 = arith.addf %32, %33 : vector<24x128xf32>
    %35 = arith.addf %34, %23 : vector<24x128xf32>
    %36 = vector.extract_strided_slice %24 {offsets = [0, 1], sizes = [24, 1], strides = [1, 1]} : vector<24x7xf32> to vector<24x1xf32>
    %37 = vector.extract_strided_slice %24 {offsets = [0, 4], sizes = [24, 1], strides = [1, 1]} : vector<24x7xf32> to vector<24x1xf32>
    %38 = vector.broadcast %36 : vector<24x1xf32> to vector<24x128xf32>
    %39 = arith.mulf %35, %38 : vector<24x128xf32>
    %cst_7 = arith.constant dense<0.000000e+00> : vector<128xf32>
    %40 = vector.multi_reduction <add>, %39, %cst_7 [0] : vector<24x128xf32> to vector<128xf32>
    %41 = vector.shape_cast %40 : vector<128xf32> to vector<1x128xf32>
    %42 = vector.broadcast %41 : vector<1x128xf32> to vector<24x128xf32>
    %43 = arith.mulf %23, %42 : vector<24x128xf32>
    %44 = vector.broadcast %37 : vector<24x1xf32> to vector<24x128xf32>
    %45 = arith.addf %43, %44 : vector<24x128xf32>
    %46 = arith.addf %45, %35 : vector<24x128xf32>
    %47 = vector.extract_strided_slice %24 {offsets = [0, 2], sizes = [24, 1], strides = [1, 1]} : vector<24x7xf32> to vector<24x1xf32>
    %48 = vector.extract_strided_slice %24 {offsets = [0, 5], sizes = [24, 1], strides = [1, 1]} : vector<24x7xf32> to vector<24x1xf32>
    %49 = vector.broadcast %47 : vector<24x1xf32> to vector<24x128xf32>
    %50 = arith.mulf %46, %49 : vector<24x128xf32>
    %cst_8 = arith.constant dense<0.000000e+00> : vector<128xf32>
    %51 = vector.multi_reduction <add>, %50, %cst_8 [0] : vector<24x128xf32> to vector<128xf32>
    %52 = vector.shape_cast %51 : vector<128xf32> to vector<1x128xf32>
    %53 = vector.broadcast %52 : vector<1x128xf32> to vector<24x128xf32>
    %54 = arith.mulf %23, %53 : vector<24x128xf32>
    %55 = vector.broadcast %48 : vector<24x1xf32> to vector<24x128xf32>
    %56 = arith.addf %54, %55 : vector<24x128xf32>
    %57 = arith.addf %56, %46 : vector<24x128xf32>
    %c0_9 = arith.constant 0 : index
    %c0_10 = arith.constant 0 : index
    %58 = vector.load %arg6[%c0_9, %c0_10] : memref<16x3xf32, #tpu.memory_space<vmem>>, vector<16x3xf32>
    %c0_11 = arith.constant 0 : index
    %c0_12 = arith.constant 0 : index
    %59 = vector.load %arg4[%c0_11, %c0_12] : memref<16x24xbf16, #tpu.memory_space<vmem>>, vector<16x24xbf16>
    %60 = vector.extract_strided_slice %58 {offsets = [0, 0], sizes = [16, 1], strides = [1, 1]} : vector<16x3xf32> to vector<16x1xf32>
    %61 = arith.truncf %23 : vector<24x128xf32> to vector<24x128xbf16>
    %cst_13 = arith.constant dense<0.000000e+00> : vector<16x128xf32>
    %62 = tpu.matmul %59, %61, %cst_13 {dimension_numbers = #tpu.dot_dimension_numbers<[1], [0], [0], [1], [0, 0, 1, 1], [], []>} : vector<16x24xbf16>, vector<24x128xbf16>, vector<16x128xf32> -> vector<16x128xf32>
    %63 = vector.broadcast %60 : vector<16x1xf32> to vector<16x128xf32>
    %64 = arith.addf %62, %63 : vector<16x128xf32>
    %cst_14 = arith.constant 0.000000e+00 : f32
    %65 = vector.broadcast %cst_14 : f32 to vector<16x128xf32>
    %66 = arith.maximumf %64, %65 : vector<16x128xf32>
    %c0_15 = arith.constant 0 : index
    %c0_16 = arith.constant 0 : index
    %67 = vector.load %arg5[%c0_15, %c0_16] : memref<8x16xbf16, #tpu.memory_space<vmem>>, vector<8x16xbf16>
    %68 = vector.extract_strided_slice %58 {offsets = [0, 1], sizes = [8, 1], strides = [1, 1]} : vector<16x3xf32> to vector<8x1xf32>
    %69 = arith.truncf %66 : vector<16x128xf32> to vector<16x128xbf16>
    %cst_17 = arith.constant dense<0.000000e+00> : vector<8x128xf32>
    %70 = tpu.matmul %67, %69, %cst_17 {dimension_numbers = #tpu.dot_dimension_numbers<[1], [0], [0], [1], [0, 0, 1, 1], [], []>} : vector<8x16xbf16>, vector<16x128xbf16>, vector<8x128xf32> -> vector<8x128xf32>
    %71 = vector.broadcast %68 : vector<8x1xf32> to vector<8x128xf32>
    %72 = arith.addf %70, %71 : vector<8x128xf32>
    %cst_18 = arith.constant 0.000000e+00 : f32
    %73 = vector.broadcast %cst_18 : f32 to vector<8x128xf32>
    %74 = arith.maximumf %72, %73 : vector<8x128xf32>
    %75 = vector.extract_strided_slice %24 {offsets = [0, 6], sizes = [24, 1], strides = [1, 1]} : vector<24x7xf32> to vector<24x1xf32>
    %76 = vector.extract_strided_slice %58 {offsets = [0, 2], sizes = [8, 1], strides = [1, 1]} : vector<16x3xf32> to vector<8x1xf32>
    %77 = vector.broadcast %75 : vector<24x1xf32> to vector<24x128xf32>
    %78 = arith.mulf %57, %77 : vector<24x128xf32>
    %cst_19 = arith.constant dense<0.000000e+00> : vector<128xf32>
    %79 = vector.multi_reduction <add>, %78, %cst_19 [0] : vector<24x128xf32> to vector<128xf32>
    %80 = vector.shape_cast %79 : vector<128xf32> to vector<1x128xf32>
    %81 = vector.broadcast %76 : vector<8x1xf32> to vector<8x128xf32>
    %82 = arith.mulf %74, %81 : vector<8x128xf32>
    %cst_20 = arith.constant dense<0.000000e+00> : vector<128xf32>
    %83 = vector.multi_reduction <add>, %82, %cst_20 [0] : vector<8x128xf32> to vector<128xf32>
    %84 = vector.shape_cast %83 : vector<128xf32> to vector<1x128xf32>
    %85 = arith.addf %80, %84 : vector<1x128xf32>
    %c0_21 = arith.constant 0 : index
    %c0_22 = arith.constant 0 : index
    %86 = memref.load %arg7[%c0_21, %c0_22] : memref<1x1xf32, #tpu.memory_space<smem>>
    %87 = vector.broadcast %86 : f32 to vector<1x128xf32>
    %88 = arith.addf %85, %87 : vector<1x128xf32>
    %89 = arith.negf %88 : vector<1x128xf32>
    %90 = math.exp %89 : vector<1x128xf32>
    %cst_23 = arith.constant 1.000000e+00 : f32
    %91 = vector.broadcast %cst_23 : f32 to vector<1x128xf32>
    %92 = arith.addf %91, %90 : vector<1x128xf32>
    %93 = arith.divf %91, %92 : vector<1x128xf32>
    %c0_24 = arith.constant 0 : index
    %c0_25 = arith.constant 0 : index
    %94 = vector.load %arg8[%c0_24, %c0_25] : memref<1x128xf32, #tpu.memory_space<vmem>>, vector<1x128xf32>
    tpu.vector_store %arg8[%c0_24, %c0_25], %93 {strides = array<i32>} : memref<1x128xf32, #tpu.memory_space<vmem>>, vector<1x128xf32>,
    return
  }
  func.func @transform_0(%arg0: i32) -> (i32, i32) {
    %c0_i32 = arith.constant 0 : i32
    %c0_i32_0 = arith.constant 0 : i32
    return %c0_i32, %arg0 : i32, i32
  }
  func.func @transform_1(%arg0: i32) -> (i32, i32) {
    %c0_i32 = arith.constant 0 : i32
    %c0_i32_0 = arith.constant 0 : i32
    %c0_i32_1 = arith.constant 0 : i32
    return %c0_i32, %c0_i32_0 : i32, i32
  }
  func.func @transform_2(%arg0: i32) -> (i32, i32) {
    %c0_i32 = arith.constant 0 : i32
    %c0_i32_0 = arith.constant 0 : i32
    %c0_i32_1 = arith.constant 0 : i32
    return %c0_i32, %c0_i32_0 : i32, i32
  }
  func.func @transform_3(%arg0: i32) -> (i32, i32) {
    %c0_i32 = arith.constant 0 : i32
    %c0_i32_0 = arith.constant 0 : i32
    %c0_i32_1 = arith.constant 0 : i32
    return %c0_i32, %c0_i32_0 : i32, i32
  }
  func.func @transform_4(%arg0: i32) -> (i32, i32) {
    %c0_i32 = arith.constant 0 : i32
    %c0_i32_0 = arith.constant 0 : i32
    %c0_i32_1 = arith.constant 0 : i32
    return %c0_i32, %c0_i32_0 : i32, i32
  }
  func.func @transform_5(%arg0: i32) -> (i32, i32) {
    %c0_i32 = arith.constant 0 : i32
    %c0_i32_0 = arith.constant 0 : i32
    %c0_i32_1 = arith.constant 0 : i32
    return %c0_i32, %c0_i32_0 : i32, i32
  }
  func.func @transform_6(%arg0: i32) -> (i32, i32) {
    %c0_i32 = arith.constant 0 : i32
    %c0_i32_0 = arith.constant 0 : i32
    %c0_i32_1 = arith.constant 0 : i32
    return %c0_i32, %c0_i32_0 : i32, i32
  }
  func.func @transform_7(%arg0: i32) -> (i32, i32) {
    %c0_i32 = arith.constant 0 : i32
    %c0_i32_0 = arith.constant 0 : i32
    return %c0_i32, %arg0 : i32, i32
  }
}

</mosaic_0001>

<llo_original>
// kernel: tpu_custom_call.1
$region0: #{tpu_custom_call.1}
  #allocation0 [shape = 'u32[]', space=smem, size = 0x4, offset = 0x4, fixed_abs, tag = 'smem constant byte address 0x4 - core index']
  #allocation1 [shape = 'u32[144,128]{1,0:T(1,128)}', space=vmem, size = 0x12000, scoped, tag = 'internal scratch']
  #allocation2 [shape = 'f32[1,1]{1,0:T(1,128)S(6)}', space=smem, size = 0x200, scoped, tag = 'scoped memory for tpu_custom_call.1']
  %s0 = inlined_call_operand.vmem [shape: s32[3,128], index: 0, kind: input, shape index: {}]
  %s1 = inlined_call_operand.vmem [shape: bf16[24,30], index: 1, kind: input, shape index: {}]
  %s2 = inlined_call_operand.vmem [shape: f32[24,7], index: 2, kind: input, shape index: {}]
  %s3 = inlined_call_operand.vmem [shape: bf16[16,24], index: 3, kind: input, shape index: {}]
  %s4 = inlined_call_operand.vmem [shape: bf16[8,16], index: 4, kind: input, shape index: {}]
  %s5 = inlined_call_operand.vmem [shape: f32[16,3], index: 5, kind: input, shape index: {}]
  %s6 = inlined_call_operand.<no memory space> [shape: f32[1,1], index: 6, kind: input, shape index: {}]
  %s7 = inlined_call_operand.hbm [shape: f32[1,128], index: 7, kind: output, shape index: {}]
  %s8 = sld [smem:[#allocation0]]
  $region38: #{tpu_custom_call.1} parent=0
    _
  %s10 = ssub.s32 1, %s8
  %s11 = scalar_select 0, %s10, %s8
  %12 = sst [smem:[#allocation2]] %s6
  $region1: #{tpu_custom_call.1} parent=0
    #allocation3 [shape = 'u8[512]{0}', space=vmem, size = 0x400, scoped, tag = 'output window, operand 0, single buffered']
    #allocation4 [shape = 's32[1]{0}', space=sflag, size = 0x4, scoped, tag = 'scoped memory for tpu_custom_call.1']
    %13 = vsyncpa [#allocation4], 0
    // Predicated region
    $region2: #{tpu_custom_call.1} parent=1 // pred_check
      _
    $region3: #{tpu_custom_call.1} parent=1 // pred_check_branch
      %15 = sbr.rel (0) target = $region5
    $region4: #{tpu_custom_call.1} parent=1 // pred_region
      _
    $region5: #{tpu_custom_call.1} parent=1 // pred_fallthru
      _
    // Predicated region
    $region6: #{tpu_custom_call.1} parent=1 // pred_check
      _
    $region7: #{tpu_custom_call.1} parent=1 // pred_check_branch
      %17 = sbr.rel (0) target = $region9
    $region8: #{tpu_custom_call.1} parent=1 // pred_region
      _
    $region9: #{tpu_custom_call.1} parent=1 // pred_fallthru
      _
    // Predicated region
    $region10: #{tpu_custom_call.1} parent=1 // pred_check
      _
    $region11: #{tpu_custom_call.1} parent=1 // pred_check_branch
      %19 = sbr.rel (0) target = $region13
    $region12: #{tpu_custom_call.1} parent=1 // pred_region
      _
    $region13: #{tpu_custom_call.1} parent=1 // pred_fallthru
      _
    // Predicated region
    $region14: #{tpu_custom_call.1} parent=1 // pred_check
      _
    $region15: #{tpu_custom_call.1} parent=1 // pred_check_branch
      %21 = sbr.rel (0) target = $region17
    $region16: #{tpu_custom_call.1} parent=1 // pred_region
      _
    $region17: #{tpu_custom_call.1} parent=1 // pred_fallthru
      _
    // Predicated region
    $region18: #{tpu_custom_call.1} parent=1 // pred_check
      _
    $region19: #{tpu_custom_call.1} parent=1 // pred_check_branch
      %23 = sbr.rel (0) target = $region21
    $region20: #{tpu_custom_call.1} parent=1 // pred_region
      _
    $region21: #{tpu_custom_call.1} parent=1 // pred_fallthru
      _
    // Predicated region
    $region22: #{tpu_custom_call.1} parent=1 // pred_check
      _
    $region23: #{tpu_custom_call.1} parent=1 // pred_check_branch
      %25 = sbr.rel (0) target = $region25
    $region24: #{tpu_custom_call.1} parent=1 // pred_region
      _
    $region25: #{tpu_custom_call.1} parent=1 // pred_fallthru
      _
    // Predicated region
    $region26: #{tpu_custom_call.1} parent=1 // pred_check
      _
    $region27: #{tpu_custom_call.1} parent=1 // pred_check_branch
      %27 = sbr.rel (0) target = $region29
    $region28: #{tpu_custom_call.1} parent=1 // pred_region
      _
    $region29: #{tpu_custom_call.1} parent=1 // pred_fallthru
      _
    %v29 = vld [vmem:[%s0] sm:$0x7]
    %v30 = vlaneseq
    %v31 = vshrl.u32 %v30, 7
    %v32 = vadd.s32 %v31, 8
    %v33 = vadd.s32 %v31, 16
    %v34 = vadd.s32 %v31, 24
    %v35 = vlaneseq
    %v36 = vshrl.u32 %v35, 7
    %v37 = vsub.s32 0, %v36
    %v38 = vrot.slane %v29, %v37
    %vm39 = vcmp.eq.s32.totalorder %v31, %v38
    %vm40 = vcmp.eq.s32.totalorder %v32, %v38
    %vm41 = vcmp.eq.s32.totalorder %v33, %v38
    %vm42 = vcmp.eq.s32.totalorder %v34, %v38
    %v43 = vsel %vm39, 1, 0
    %v44 = vsel %vm40, 1, 0
    %v45 = vsel %vm41, 1, 0
    %v46 = vsel %vm42, 1, 0
    %v47 = vcvt.s32.f32 %v43
    %v48 = vcvt.s32.f32 %v44
    %v49 = vcvt.s32.f32 %v45
    %v50 = vcvt.s32.f32 %v46
    %v51 = vadd.f32 %v47, 0.0
    %v52 = vadd.f32 %v48, 0.0
    %v53 = vadd.f32 %v49, 0.0
    %v54 = vadd.f32 %v50, 0.0
    %v55 = vlaneseq
    %v56 = vshrl.u32 %v55, 7
    %v57 = vsub.s32 1, %v56
    %v58 = vrot.slane %v29, %v57
    %vm59 = vcmp.eq.s32.totalorder %v31, %v58
    %vm60 = vcmp.eq.s32.totalorder %v32, %v58
    %vm61 = vcmp.eq.s32.totalorder %v33, %v58
    %vm62 = vcmp.eq.s32.totalorder %v34, %v58
    %v63 = vsel %vm59, 1, 0
    %v64 = vsel %vm60, 1, 0
    %v65 = vsel %vm61, 1, 0
    %v66 = vsel %vm62, 1, 0
    %v67 = vcvt.s32.f32 %v63
    %v68 = vcvt.s32.f32 %v64
    %v69 = vcvt.s32.f32 %v65
    %v70 = vcvt.s32.f32 %v66
    %v71 = vadd.f32 %v51, %v67
    %v72 = vadd.f32 %v52, %v68
    %v73 = vadd.f32 %v53, %v69
    %v74 = vadd.f32 %v54, %v70
    %v75 = vlaneseq
    %v76 = vshrl.u32 %v75, 7
    %v77 = vsub.s32 2, %v76
    %v78 = vrot.slane %v29, %v77
    %vm79 = vcmp.eq.s32.totalorder %v31, %v78
    %vm80 = vcmp.eq.s32.totalorder %v32, %v78
    %vm81 = vcmp.eq.s32.totalorder %v33, %v78
    %vm82 = vcmp.eq.s32.totalorder %v34, %v78
    %v83 = vsel %vm79, 1, 0
    %v84 = vsel %vm80, 1, 0
    %v85 = vsel %vm81, 1, 0
    %v86 = vsel %vm82, 1, 0
    %v87 = vcvt.s32.f32 %v83
    %v88 = vcvt.s32.f32 %v84
    %v89 = vcvt.s32.f32 %v85
    %v90 = vcvt.s32.f32 %v86
    %v91 = vadd.f32 %v71, %v87
    %v92 = vadd.f32 %v72, %v88
    %v93 = vadd.f32 %v73, %v89
    %v94 = vadd.f32 %v74, %v90
    %v95 = vld [vmem:[%s1] sm:$0xf]
    %v96 = vld [vmem:[%s1 + $0x4] sm:$0xf]
    %v97 = vld [vmem:[%s1 + $0x8] sm:$0xf]
    %v98 = vpack.c.bf16 %v92, %v91
    %v99 = vpack.c.bf16 %v94, %v93
    %v103 = vunpack.c.l.b16 %v95
    %v104 = vunpack.c.l.b16 %v96
    %v105 = vunpack.c.l.b16 %v97
    %v106 = vpack.c.b16 %v104, %v103
    %v107 = vpack.c.b16 %v105, %v105
    %vm108 = vcmask 244736
    %v110 = vsel %vm108, %v106, 0
    %v113 = vsel %vm108, %v107, 0
    %vm115 = vcmask 1046528
    %v117 = vsel %vm115, %v99, 0
    %119 = vmatprep.subr.bf16.mxu0 0
    %120 = vmatpush1.bf16.msra.mxu0 %v98
    %121 = vmatprep.subr.bf16.mxu0 0
    %122 = vmatpush1.bf16.msra.mxu0 %v117
    %123 = vmatprep.subr.bf16.mxu0 0
    %124 = vmatpush1.bf16.msra.mxu0 0
    %125 = vmatprep.subr.bf16.mxu0 0
    %126 = vmatpush1.bf16.msra.mxu0 0
    %127 = vmatprep.subr.bf16.mxu0 0
    %128 = vmatpush1.bf16.msra.mxu0 0
    %129 = vmatprep.subr.bf16.mxu0 0
    %130 = vmatpush1.bf16.msra.mxu0 0
    %131 = vmatprep.subr.bf16.mxu0 0
    %132 = vmatpush1.bf16.msra.mxu0 0
    %133 = vmatprep.subr.bf16.mxu0 0
    %134 = vmatpush1.bf16.msra.mxu0 0
    %135 = vmatprep.subr.bf16.mxu0 0
    %136 = vmatpush1.bf16.msra.mxu0 0
    %137 = vmatprep.subr.bf16.mxu0 0
    %138 = vmatpush1.bf16.msra.mxu0 0
    %139 = vmatprep.subr.bf16.mxu0 0
    %140 = vmatpush1.bf16.msra.mxu0 0
    %141 = vmatprep.subr.bf16.mxu0 0
    %142 = vmatpush1.bf16.msra.mxu0 0
    %143 = vmatprep.subr.bf16.mxu0 0
    %144 = vmatpush1.bf16.msra.mxu0 0
    %145 = vmatprep.subr.bf16.mxu0 0
    %146 = vmatpush1.bf16.msra.mxu0 0
    %147 = vmatprep.subr.bf16.mxu0 0
    %148 = vmatpush1.bf16.msra.mxu0 0
    %149 = vmatprep.subr.bf16.mxu0 0
    %150 = vmatpush1.bf16.msra.mxu0 0
    %151 = vmatprep.mubr.bf16.mxu0 0
    %152 = vmatmul.mubr.bf16.gmra.mrb[0].mxu0 %v110
    %v153 = vpop.f32.mrb[0].mxu0
    %v154 = vadd.f32 0.0, %v153
    %v155 = vpop.f32.mrb[0].mxu0
    %v156 = vpop.f32.mrb[0].mxu0
    %v157 = vadd.f32 0.0, %v156
    %v158 = vpop.f32.mrb[0].mxu0
    %159 = vmatprep.mubr.bf16.mxu0 0
    %160 = vmatmul.mubr.bf16.gmra.mrb[0].mxu0 %v113
    %v161 = vpop.f32.mrb[0].mxu0
    %v162 = vadd.f32 0.0, %v161
    %v163 = vpop.f32.mrb[0].mxu0
    %v164 = vpop.f32.mrb[0].mxu0
    %v165 = vpop.f32.mrb[0].mxu0
    %166 = vdwg.mxu0
    %v167 = vld [vmem:[%s2] sm:$0xff]
    %v168 = vld [vmem:[%s2 + $0x8] sm:$0xff]
    %v169 = vld [vmem:[%s2 + $0x10] sm:$0xff]
    %171 = vset.pattern.permute.xlu0 0
    %172 = vperm.xlu0 %171, %v167
    %v173 = vpop.permute.xlu0 %172
    %176 = vset.pattern.permute.xlu0 0
    %177 = vperm.xlu0 %176, %v168
    %v178 = vpop.permute.xlu0 %177
    %181 = vset.pattern.permute.xlu0 0
    %182 = vperm.xlu0 %181, %v169
    %v183 = vpop.permute.xlu0 %182
    %v185 = vmul.f32 %v154, %v173
    %v186 = vmul.f32 %v157, %v178
    %v187 = vmul.f32 %v162, %v183
    %v188 = vadd.f32 %v185, %v186
    %v189 = vadd.f32 %v188, %v187
    %v190 = vrot.slane %v189, 4
    %v191 = vadd.f32 %v189, %v190
    %v192 = vrot.slane %v191, 2
    %v193 = vadd.f32 %v191, %v192
    %v194 = vrot.slane %v193, 1
    %v195 = vadd.f32 %v193, %v194
    %v196 = vmul.f32 %v154, %v195
    %v197 = vmul.f32 %v157, %v195
    %v198 = vmul.f32 %v162, %v195
    %199 = vset.pattern.permute.xlu0 3
    %200 = vperm.xlu0 %199, %v167
    %v201 = vpop.permute.xlu0 %200
    %203 = vset.pattern.permute.xlu0 3
    %204 = vperm.xlu0 %203, %v168
    %v205 = vpop.permute.xlu0 %204
    %207 = vset.pattern.permute.xlu0 3
    %208 = vperm.xlu0 %207, %v169
    %v209 = vpop.permute.xlu0 %208
    %v211 = vadd.f32 %v196, %v201
    %v212 = vadd.f32 %v197, %v205
    %v213 = vadd.f32 %v198, %v209
    %v214 = vadd.f32 %v211, %v154
    %v215 = vadd.f32 %v212, %v157
    %v216 = vadd.f32 %v213, %v162
    %217 = vset.pattern.permute.xlu0 1
    %218 = vperm.xlu0 %217, %v167
    %v219 = vpop.permute.xlu0 %218
    %221 = vset.pattern.permute.xlu0 1
    %222 = vperm.xlu0 %221, %v168
    %v223 = vpop.permute.xlu0 %222
    %225 = vset.pattern.permute.xlu0 1
    %226 = vperm.xlu0 %225, %v169
    %v227 = vpop.permute.xlu0 %226
    %v229 = vmul.f32 %v214, %v219
    %v230 = vmul.f32 %v215, %v223
    %v231 = vmul.f32 %v216, %v227
    %v232 = vadd.f32 %v229, %v230
    %v233 = vadd.f32 %v232, %v231
    %v234 = vrot.slane %v233, 4
    %v235 = vadd.f32 %v233, %v234
    %v236 = vrot.slane %v235, 2
    %v237 = vadd.f32 %v235, %v236
    %v238 = vrot.slane %v237, 1
    %v239 = vadd.f32 %v237, %v238
    %v240 = vmul.f32 %v154, %v239
    %v241 = vmul.f32 %v157, %v239
    %v242 = vmul.f32 %v162, %v239
    %243 = vset.pattern.permute.xlu0 4
    %244 = vperm.xlu0 %243, %v167
    %v245 = vpop.permute.xlu0 %244
    %247 = vset.pattern.permute.xlu0 4
    %248 = vperm.xlu0 %247, %v168
    %v249 = vpop.permute.xlu0 %248
    %251 = vset.pattern.permute.xlu0 4
    %252 = vperm.xlu0 %251, %v169
    %v253 = vpop.permute.xlu0 %252
    %v255 = vadd.f32 %v240, %v245
    %v256 = vadd.f32 %v241, %v249
    %v257 = vadd.f32 %v242, %v253
    %v258 = vadd.f32 %v255, %v214
    %v259 = vadd.f32 %v256, %v215
    %v260 = vadd.f32 %v257, %v216
    %261 = vset.pattern.permute.xlu0 2
    %262 = vperm.xlu0 %261, %v167
    %v263 = vpop.permute.xlu0 %262
    %265 = vset.pattern.permute.xlu0 2
    %266 = vperm.xlu0 %265, %v168
    %v267 = vpop.permute.xlu0 %266
    %269 = vset.pattern.permute.xlu0 2
    %270 = vperm.xlu0 %269, %v169
    %v271 = vpop.permute.xlu0 %270
    %v273 = vmul.f32 %v258, %v263
    %v274 = vmul.f32 %v259, %v267
    %v275 = vmul.f32 %v260, %v271
    %v276 = vadd.f32 %v273, %v274
    %v277 = vadd.f32 %v276, %v275
    %v278 = vrot.slane %v277, 4
    %v279 = vadd.f32 %v277, %v278
    %v280 = vrot.slane %v279, 2
    %v281 = vadd.f32 %v279, %v280
    %v282 = vrot.slane %v281, 1
    %v283 = vadd.f32 %v281, %v282
    %v284 = vmul.f32 %v154, %v283
    %v285 = vmul.f32 %v157, %v283
    %v286 = vmul.f32 %v162, %v283
    %287 = vset.pattern.permute.xlu0 5
    %288 = vperm.xlu0 %287, %v167
    %v289 = vpop.permute.xlu0 %288
    %291 = vset.pattern.permute.xlu0 5
    %292 = vperm.xlu0 %291, %v168
    %v293 = vpop.permute.xlu0 %292
    %295 = vset.pattern.permute.xlu0 5
    %296 = vperm.xlu0 %295, %v169
    %v297 = vpop.permute.xlu0 %296
    %v299 = vadd.f32 %v284, %v289
    %v300 = vadd.f32 %v285, %v293
    %v301 = vadd.f32 %v286, %v297
    %v302 = vadd.f32 %v299, %v258
    %v303 = vadd.f32 %v300, %v259
    %v304 = vadd.f32 %v301, %v260
    %v305 = vld [vmem:[%s5] sm:$0xff]
    %v306 = vld [vmem:[%s5 + $0x8] sm:$0xff]
    %v307 = vld [vmem:[%s3] sm:$0xf]
    %v308 = vld [vmem:[%s3 + $0x4] sm:$0xf]
    %v309 = vpack.c.bf16 %v157, %v154
    %v310 = vpack.c.bf16 %v162, %v162
    %312 = vset.pattern.permute.xlu0 0
    %313 = vperm.xlu0 %312, %v305
    %v314 = vpop.permute.xlu0 %313
    %317 = vset.pattern.permute.xlu0 0
    %318 = vperm.xlu0 %317, %v306
    %v319 = vpop.permute.xlu0 %318
    %v323 = vunpack.c.l.b16 %v307
    %v324 = vunpack.c.l.b16 %v308
    %v325 = vpack.c.b16 %v324, %v323
    %vm326 = vcmask 195584
    %v328 = vsel %vm326, %v325, 0
    %vm330 = vcmask 1043456
    %v332 = vsel %vm330, %v310, 0
    %334 = vmatprep.subr.bf16.mxu0 0
    %335 = vmatpush1.bf16.msra.mxu0 %v309
    %336 = vmatprep.subr.bf16.mxu0 0
    %337 = vmatpush1.bf16.msra.mxu0 %v332
    %338 = vmatprep.subr.bf16.mxu0 0
    %339 = vmatpush1.bf16.msra.mxu0 0
    %340 = vmatprep.subr.bf16.mxu0 0
    %341 = vmatpush1.bf16.msra.mxu0 0
    %342 = vmatprep.subr.bf16.mxu0 0
    %343 = vmatpush1.bf16.msra.mxu0 0
    %344 = vmatprep.subr.bf16.mxu0 0
    %345 = vmatpush1.bf16.msra.mxu0 0
    %346 = vmatprep.subr.bf16.mxu0 0
    %347 = vmatpush1.bf16.msra.mxu0 0
    %348 = vmatprep.subr.bf16.mxu0 0
    %349 = vmatpush1.bf16.msra.mxu0 0
    %350 = vmatprep.subr.bf16.mxu0 0
    %351 = vmatpush1.bf16.msra.mxu0 0
    %352 = vmatprep.subr.bf16.mxu0 0
    %353 = vmatpush1.bf16.msra.mxu0 0
    %354 = vmatprep.subr.bf16.mxu0 0
    %355 = vmatpush1.bf16.msra.mxu0 0
    %356 = vmatprep.subr.bf16.mxu0 0
    %357 = vmatpush1.bf16.msra.mxu0 0
    %358 = vmatprep.subr.bf16.mxu0 0
    %359 = vmatpush1.bf16.msra.mxu0 0
    %360 = vmatprep.subr.bf16.mxu0 0
    %361 = vmatpush1.bf16.msra.mxu0 0
    %362 = vmatprep.subr.bf16.mxu0 0
    %363 = vmatpush1.bf16.msra.mxu0 0
    %364 = vmatprep.subr.bf16.mxu0 0
    %365 = vmatpush1.bf16.msra.mxu0 0
    %366 = vmatprep.mubr.bf16.mxu0 0
    %367 = vmatmul.mubr.bf16.gmra.mrb[0].mxu0 %v328
    %v368 = vpop.f32.mrb[0].mxu0
    %v369 = vadd.f32 %v314, %v368
    %v370 = vpop.f32.mrb[0].mxu0
    %v371 = vpop.f32.mrb[0].mxu0
    %v372 = vadd.f32 %v319, %v371
    %v373 = vpop.f32.mrb[0].mxu0
    %374 = vdwg.mxu0
    %v375 = vmax.f32 %v369, 0.0
    %v376 = vmax.f32 %v372, 0.0
    %v377 = vld [vmem:[%s4] sm:$0xf]
    %v378 = vpack.c.bf16 %v376, %v375
    %379 = vset.pattern.permute.xlu0 1
    %380 = vperm.xlu0 %379, %v305
    %v381 = vpop.permute.xlu0 %380
    %vm383 = vcmask 130048
    %v385 = vsel %vm383, %v377, 0
    %387 = vmatprep.subr.bf16.mxu0 0
    %388 = vmatpush1.bf16.msra.mxu0 %v378
    %389 = vmatprep.subr.bf16.mxu0 0
    %390 = vmatpush1.bf16.msra.mxu0 0
    %391 = vmatprep.subr.bf16.mxu0 0
    %392 = vmatpush1.bf16.msra.mxu0 0
    %393 = vmatprep.subr.bf16.mxu0 0
    %394 = vmatpush1.bf16.msra.mxu0 0
    %395 = vmatprep.subr.bf16.mxu0 0
    %396 = vmatpush1.bf16.msra.mxu0 0
    %397 = vmatprep.subr.bf16.mxu0 0
    %398 = vmatpush1.bf16.msra.mxu0 0
    %399 = vmatprep.subr.bf16.mxu0 0
    %400 = vmatpush1.bf16.msra.mxu0 0
    %401 = vmatprep.subr.bf16.mxu0 0
    %402 = vmatpush1.bf16.msra.mxu0 0
    %403 = vmatprep.subr.bf16.mxu0 0
    %404 = vmatpush1.bf16.msra.mxu0 0
    %405 = vmatprep.subr.bf16.mxu0 0
    %406 = vmatpush1.bf16.msra.mxu0 0
    %407 = vmatprep.subr.bf16.mxu0 0
    %408 = vmatpush1.bf16.msra.mxu0 0
    %409 = vmatprep.subr.bf16.mxu0 0
    %410 = vmatpush1.bf16.msra.mxu0 0
    %411 = vmatprep.subr.bf16.mxu0 0
    %412 = vmatpush1.bf16.msra.mxu0 0
    %413 = vmatprep.subr.bf16.mxu0 0
    %414 = vmatpush1.bf16.msra.mxu0 0
    %415 = vmatprep.subr.bf16.mxu0 0
    %416 = vmatpush1.bf16.msra.mxu0 0
    %417 = vmatprep.subr.bf16.mxu0 0
    %418 = vmatpush1.bf16.msra.mxu0 0
    %419 = vmatprep.mubr.bf16.mxu0 0
    %420 = vmatmul.mubr.bf16.gmra.mrb[0].mxu0 %v385
    %v421 = vpop.f32.mrb[0].mxu0
    %v422 = vadd.f32 %v381, %v421
    %v423 = vpop.f32.mrb[0].mxu0
    %v424 = vpop.f32.mrb[0].mxu0
    %v425 = vpop.f32.mrb[0].mxu0
    %426 = vdwg.mxu0
    %v427 = vmax.f32 %v422, 0.0
    %428 = vset.pattern.permute.xlu0 6
    %429 = vperm.xlu0 %428, %v167
    %v430 = vpop.permute.xlu0 %429
    %432 = vset.pattern.permute.xlu0 6
    %433 = vperm.xlu0 %432, %v168
    %v434 = vpop.permute.xlu0 %433
    %436 = vset.pattern.permute.xlu0 6
    %437 = vperm.xlu0 %436, %v169
    %v438 = vpop.permute.xlu0 %437
    %v440 = vmul.f32 %v302, %v430
    %v441 = vmul.f32 %v303, %v434
    %v442 = vmul.f32 %v304, %v438
    %v443 = vadd.f32 %v440, %v441
    %v444 = vadd.f32 %v443, %v442
    %v445 = vrot.slane %v444, 4
    %v446 = vadd.f32 %v444, %v445
    %v447 = vrot.slane %v446, 2
    %v448 = vadd.f32 %v446, %v447
    %v449 = vrot.slane %v448, 1
    %v450 = vadd.f32 %v448, %v449
    %451 = vset.pattern.permute.xlu0 2
    %452 = vperm.xlu0 %451, %v305
    %v453 = vpop.permute.xlu0 %452
    %v455 = vmul.f32 %v427, %v453
    %v456 = vrot.slane %v455, 4
    %v457 = vadd.f32 %v455, %v456
    %v458 = vrot.slane %v457, 2
    %v459 = vadd.f32 %v457, %v458
    %v460 = vrot.slane %v459, 1
    %v461 = vadd.f32 %v459, %v460
    %v462 = vadd.f32 %v450, %v461
    %s463 = sld [smem:[#allocation2]]
    %v464 = vstv %s463
    %v465 = vadd.f32 %v462, %v464
    %v466 = vxor.u32 %v465, 2147483648
    %v467 = vmul.f32 %v466, 1.442695
    %v468 = vpow.pop %v467
    %v469 = vadd.f32 %v468, 1.0
    %v470 = vrcp.pop %v469
    %v471 = vmul.f32 1.0, %v470
    %472 = vst [vmem:[#allocation3] sm:$0x1] %v471
    // Predicated region
    $region30: #{tpu_custom_call.1} parent=1 // pred_check
      _
    $region31: #{tpu_custom_call.1} parent=1 // pred_check_branch
      %474 = sbr.rel (0) target = $region33
    $region32: #{tpu_custom_call.1} parent=1 // pred_region
      %s476 = ssub.s32 16, 16
      %477 = vsyncadd [#allocation4], %s476
      %s479 = sshll.u32 [#allocation3], 4
      %s480 = int_to_ptr.vmem [resolvable:$true] %s479
      %482 = dma.vmem_to_hbm [thread:$0]  %s480, 16, %s7, [#allocation4]
    $region33: #{tpu_custom_call.1} parent=1 // pred_fallthru
      _
    // Predicated region
    $region34: #{tpu_custom_call.1} parent=1 // pred_check
      _
    $region35: #{tpu_custom_call.1} parent=1 // pred_check_branch
      %484 = sbr.rel (0) target = $region37
    $region36: #{tpu_custom_call.1} parent=1 // pred_region
      %485 = dma.done [#allocation4], 16
    $region37: #{tpu_custom_call.1} parent=1 // pred_fallthru
      _
    %486 = vsyncpa [#allocation4], 1

</llo_original>
